<compile_context>
chip_gen: v5e
topology: v5e:2x2
jax: 0.10.0
libtpu: 0.0.40
codegen_flags: <defaults>
</compile_context>

<pallas_src>
import functools

import jax
import jax.numpy as jnp
from jax.experimental import pallas as pl
from jax.experimental.pallas import tpu as pltpu


def _round_up(n, m):
    return ((n + m - 1) // m) * m


def _mlp_kernel(x_ref, w1_ref, b1_ref, w2_ref, b2_ref, o_ref):
    # x_ref : (TB, num_inputs)       f32   (cast to MXU dtype in-kernel)
    # w1_ref: (num_inputs, H_pad)    bf16
    # b1_ref: (1, H_pad)             f32
    # w2_ref: (H_pad, num_outputs)   bf16
    # b2_ref: (1, num_outputs)       f32
    # o_ref : (TB, num_outputs)      f32
    x = x_ref[...].astype(w1_ref.dtype)
    h = jnp.dot(x, w1_ref[...], preferred_element_type=jnp.float32) + b1_ref[...]
    h = jnp.tanh(h)                     # f32 epilogue (safe on v5e VPU/EUP)
    h = h.astype(w2_ref.dtype)          # back to MXU dtype for 2nd matmul
    y = jnp.dot(h, w2_ref[...], preferred_element_type=jnp.float32) + b2_ref[...]
    o_ref[...] = y.astype(o_ref.dtype)


def prepare_params(w1, b1, w2, b2, *, use_bf16=True):
    """One-time (cacheable) weight prep: pad hidden dim to 128 lanes + cast.

    w1: (num_inputs, num_hidden)   (transposed vs PyTorch weight layout)
    b1: (num_hidden,)
    w2: (num_hidden, num_outputs)  (transposed vs PyTorch weight layout)
    b2: (num_outputs,)
    """
    num_hidden = w1.shape[1]
    num_outputs = w2.shape[1]
    mxu_dtype = jnp.bfloat16 if use_bf16 else jnp.float32
    H_pad = _round_up(num_hidden, 128)      # keep at 128-lane multiple, NOT 256

    w1_p = jnp.pad(w1, ((0, 0), (0, H_pad - num_hidden))).astype(mxu_dtype)
    b1_p = jnp.pad(b1, (0, H_pad - num_hidden)).reshape(1, H_pad).astype(jnp.float32)
    w2_p = jnp.pad(w2, ((0, H_pad - num_hidden), (0, 0))).astype(mxu_dtype)
    b2_p = b2.reshape(1, num_outputs).astype(jnp.float32)
    return w1_p, b1_p, w2_p, b2_p


def net_forward_prepared(x, w1_p, b1_p, w2_p, b2_p, *, tile_b=1024):
    """Forward pass using pre-padded / pre-cast weights.

    x: (B, num_inputs) f32 -> (B, num_outputs) f32
    """
    B, num_inputs = x.shape
    H_pad = w1_p.shape[1]
    num_outputs = w2_p.shape[1]

    # Large batch tile (amortize per-step overhead), multiple of 8 sublanes,
    # clamped so the grid keeps >= 2 steps where possible (v7x: 2 TCs on the
    # parallel batch axis; the extra step is negligible on v5e/v6e).
    TB = min(tile_b, max(8, _round_up(-(-B // 2), 8)))
    B_pad = _round_up(B, TB)

    x_p = x if B_pad == B else jnp.pad(x, ((0, B_pad - B), (0, 0)))

    grid = (B_pad // TB,)

    flops = 2 * B_pad * (num_inputs * H_pad + H_pad * num_outputs)
    bytes_accessed = (
        B_pad * num_inputs * 4                       # x (f32 in)
        + w1_p.size * w1_p.dtype.itemsize
        + b1_p.size * 4
        + w2_p.size * w2_p.dtype.itemsize
        + b2_p.size * 4
        + B_pad * num_outputs * 4                    # out (f32)
    )

    out = pl.pallas_call(
        _mlp_kernel,
        out_shape=jax.ShapeDtypeStruct((B_pad, num_outputs), jnp.float32),
        grid=grid,
        in_specs=[
            # x: moves with the batch tile
            pl.BlockSpec((TB, num_inputs), lambda i: (i, 0)),
            # weights / biases: constant index_map -> VMEM-resident across grid
            pl.BlockSpec((num_inputs, H_pad), lambda i: (0, 0)),
            pl.BlockSpec((1, H_pad), lambda i: (0, 0)),
            pl.BlockSpec((H_pad, num_outputs), lambda i: (0, 0)),
            pl.BlockSpec((1, num_outputs), lambda i: (0, 0)),
        ],
        # Block last dim equals the full array dim -> no feature padding on the
        # output stream (8x less f32 writeback than a 128-lane-padded output),
        # and no separate wrapper slice pass.
        out_specs=pl.BlockSpec((TB, num_outputs), lambda i: (i, 0)),
        compiler_params=pltpu.CompilerParams(
            dimension_semantics=("parallel",)),      # v7x: split batch over 2 TCs
        cost_estimate=pl.CostEstimate(
            flops=flops,
            transcendentals=B_pad * H_pad,           # tanh
            bytes_accessed=bytes_accessed),
    )(x_p, w1_p, b1_p, w2_p, b2_p)

    if B_pad != B:
        out = out[:B]
    return out


def net_forward(x, w1, b1, w2, b2, *, tile_b=1024, use_bf16=True):
    """Convenience wrapper: prep weights + forward in one call."""
    params = prepare_params(w1, b1, w2, b2, use_bf16=use_bf16)
    return net_forward_prepared(x, *params, tile_b=tile_b)


def reference_forward(x, w1, b1, w2, b2):
    h = jnp.tanh(x @ w1 + b1)
    return h @ w2 + b2


if __name__ == "__main__":
    # Small shapes consistent with the module; batch big enough for 2 tiles.
    B, num_inputs, num_hidden, num_outputs = 256, 32, 64, 16

    key = jax.random.PRNGKey(0)
    kx, k1, kb1, k2, kb2 = jax.random.split(key, 5)

    x = jax.random.normal(kx, (B, num_inputs), dtype=jnp.float32)

    # PyTorch-style uniform init, stored as (in_features, out_features).
    bound1 = 1.0 / (num_inputs ** 0.5)
    w1 = jax.random.uniform(k1, (num_inputs, num_hidden), jnp.float32, -bound1, bound1)
    b1 = jax.random.uniform(kb1, (num_hidden,), jnp.float32, -bound1, bound1)

    bound2 = 1.0 / (num_hidden ** 0.5)
    w2 = jax.random.uniform(k2, (num_hidden, num_outputs), jnp.float32, -bound2, bound2)
    b2 = jax.random.uniform(kb2, (num_outputs,), jnp.float32, -bound2, bound2)

    # Weight prep hoisted out of the hot path (cache these across calls).
    params = tuple(jax.block_until_ready(p)
                   for p in prepare_params(w1, b1, w2, b2))

    fwd = jax.jit(functools.partial(net_forward_prepared, tile_b=1024))
    out = fwd(x, *params)
    out = jax.block_until_ready(out)

    ref = reference_forward(x, w1, b1, w2, b2)
    assert out.shape == (B, num_outputs)
    assert out.dtype == jnp.float32
    # bf16 MXU inputs with f32 accumulation -> loose-ish tolerance vs pure-f32 ref.
    assert jnp.allclose(out, ref, atol=5e-2, rtol=5e-2), "mismatch vs reference"

    # Tight check against an exactly-matching mixed-precision reference.
    xb, w1b, w2b = (a.astype(jnp.bfloat16).astype(jnp.float32) for a in (x, w1, w2))
    hb = jnp.tanh(xb @ w1b + b1).astype(jnp.bfloat16).astype(jnp.float32)
    ref_mp = hb @ w2b + b2
    assert jnp.allclose(out, ref_mp, atol=1e-4, rtol=1e-4), \
        "mismatch vs mixed-precision reference"

    print("KERNEL_OK")
</pallas_src>

<mosaic_0001>
module attributes {stable_mosaic.version = 11 : i64} {
  func.func @_mlp_kernel(%arg0: i32, %arg1: memref<128x32xf32, #tpu.memory_space<vmem>>, %arg2: memref<32x128xbf16, #tpu.memory_space<vmem>>, %arg3: memref<1x128xf32, #tpu.memory_space<vmem>>, %arg4: memref<128x16xbf16, #tpu.memory_space<vmem>>, %arg5: memref<1x16xf32, #tpu.memory_space<vmem>>, %arg6: memref<128x16xf32, #tpu.memory_space<vmem>>) attributes {dimension_semantics = [#tpu.dimension_semantics<parallel>], iteration_bounds = array<i64: 2>, scalar_prefetch = 0 : i64, scratch_operands = 0 : i64, tpu.core_type = #tpu.core_type<tc>, window_params = [{transform_indices = @transform_0, window_bounds = array<i64: 128, 32>}, {pipeline_mode = #tpu.pipeline_mode<synchronous>, transform_indices = @transform_1, window_bounds = array<i64: 32, 128>}, {pipeline_mode = #tpu.pipeline_mode<synchronous>, transform_indices = @transform_2, window_bounds = array<i64: 1, 128>}, {pipeline_mode = #tpu.pipeline_mode<synchronous>, transform_indices = @transform_3, window_bounds = array<i64: 128, 16>}, {pipeline_mode = #tpu.pipeline_mode<synchronous>, transform_indices = @transform_4, window_bounds = array<i64: 1, 16>}, {transform_indices = @transform_5, window_bounds = array<i64: 128, 16>}]} {
    %c0 = arith.constant 0 : index
    %c0_0 = arith.constant 0 : index
    %0 = vector.load %arg1[%c0, %c0_0] : memref<128x32xf32, #tpu.memory_space<vmem>>, vector<128x32xf32>
    %1 = arith.truncf %0 : vector<128x32xf32> to vector<128x32xbf16>
    %c0_1 = arith.constant 0 : index
    %c0_2 = arith.constant 0 : index
    %2 = vector.load %arg2[%c0_1, %c0_2] : memref<32x128xbf16, #tpu.memory_space<vmem>>, vector<32x128xbf16>
    %cst = arith.constant dense<0.000000e+00> : vector<128x128xf32>
    %3 = tpu.matmul %1, %2, %cst {dimension_numbers = #tpu.dot_dimension_numbers<[1], [0], [0], [1], [0, 0, 1, 1], [], []>} : vector<128x32xbf16>, vector<32x128xbf16>, vector<128x128xf32> -> vector<128x128xf32>
    %c0_3 = arith.constant 0 : index
    %c0_4 = arith.constant 0 : index
    %4 = vector.load %arg3[%c0_3, %c0_4] : memref<1x128xf32, #tpu.memory_space<vmem>>, vector<1x128xf32>
    %5 = vector.broadcast %4 : vector<1x128xf32> to vector<128x128xf32>
    %6 = arith.addf %3, %5 : vector<128x128xf32>
    %7 = math.tanh %6 : vector<128x128xf32>
    %8 = arith.truncf %7 : vector<128x128xf32> to vector<128x128xbf16>
    %c0_5 = arith.constant 0 : index
    %c0_6 = arith.constant 0 : index
    %9 = vector.load %arg4[%c0_5, %c0_6] : memref<128x16xbf16, #tpu.memory_space<vmem>>, vector<128x16xbf16>
    %cst_7 = arith.constant dense<0.000000e+00> : vector<128x16xf32>
    %10 = tpu.matmul %8, %9, %cst_7 {dimension_numbers = #tpu.dot_dimension_numbers<[1], [0], [0], [1], [0, 0, 1, 1], [], []>} : vector<128x128xbf16>, vector<128x16xbf16>, vector<128x16xf32> -> vector<128x16xf32>
    %c0_8 = arith.constant 0 : index
    %c0_9 = arith.constant 0 : index
    %11 = vector.load %arg5[%c0_8, %c0_9] : memref<1x16xf32, #tpu.memory_space<vmem>>, vector<1x16xf32>
    %12 = vector.broadcast %11 : vector<1x16xf32> to vector<128x16xf32>
    %13 = arith.addf %10, %12 : vector<128x16xf32>
    %c0_10 = arith.constant 0 : index
    %c0_11 = arith.constant 0 : index
    %14 = vector.load %arg6[%c0_10, %c0_11] : memref<128x16xf32, #tpu.memory_space<vmem>>, vector<128x16xf32>
    tpu.vector_store %arg6[%c0_10, %c0_11], %13 {strides = array<i32>} : memref<128x16xf32, #tpu.memory_space<vmem>>, vector<128x16xf32>,
    return
  }
  func.func @transform_0(%arg0: i32) -> (i32, i32) {
    %c0_i32 = arith.constant 0 : i32
    %c0_i32_0 = arith.constant 0 : i32
    return %arg0, %c0_i32 : i32, i32
  }
  func.func @transform_1(%arg0: i32) -> (i32, i32) {
    %c0_i32 = arith.constant 0 : i32
    %c0_i32_0 = arith.constant 0 : i32
    %c0_i32_1 = arith.constant 0 : i32
    return %c0_i32, %c0_i32_0 : i32, i32
  }
  func.func @transform_2(%arg0: i32) -> (i32, i32) {
    %c0_i32 = arith.constant 0 : i32
    %c0_i32_0 = arith.constant 0 : i32
    %c0_i32_1 = arith.constant 0 : i32
    return %c0_i32, %c0_i32_0 : i32, i32
  }
  func.func @transform_3(%arg0: i32) -> (i32, i32) {
    %c0_i32 = arith.constant 0 : i32
    %c0_i32_0 = arith.constant 0 : i32
    %c0_i32_1 = arith.constant 0 : i32
    return %c0_i32, %c0_i32_0 : i32, i32
  }
  func.func @transform_4(%arg0: i32) -> (i32, i32) {
    %c0_i32 = arith.constant 0 : i32
    %c0_i32_0 = arith.constant 0 : i32
    %c0_i32_1 = arith.constant 0 : i32
    return %c0_i32, %c0_i32_0 : i32, i32
  }
  func.func @transform_5(%arg0: i32) -> (i32, i32) {
    %c0_i32 = arith.constant 0 : i32
    %c0_i32_0 = arith.constant 0 : i32
    return %arg0, %c0_i32 : i32, i32
  }
}

</mosaic_0001>

<llo_original>
// kernel: net_forward_prepared.1
$region0: #{net_forward_prepared.1}
  #allocation0 [shape = 'u32[]', space=smem, size = 0x4, offset = 0x4, fixed_abs, tag = 'smem constant byte address 0x4 - core index']
  #allocation1 [shape = 'u32[72,128]{1,0:T(1,128)}', space=vmem, size = 0x9000, scoped, tag = 'internal scratch']
  %s0 = inlined_call_operand.vmem [shape: f32[256,32], index: 0, kind: input, shape index: {}]
  %s1 = inlined_call_operand.vmem [shape: bf16[32,128], index: 1, kind: input, shape index: {}]
  %s2 = inlined_call_operand.vmem [shape: f32[1,128], index: 2, kind: input, shape index: {}]
  %s3 = inlined_call_operand.vmem [shape: bf16[128,16], index: 3, kind: input, shape index: {}]
  %s4 = inlined_call_operand.vmem [shape: f32[1,16], index: 4, kind: input, shape index: {}]
  %s5 = inlined_call_operand.vmem [shape: f32[256,16], index: 5, kind: output, shape index: {}]
  %s6 = sld [smem:[#allocation0]]
  $region53: #{net_forward_prepared.1} parent=0
    _
  %s8 = ssub.s32 1, %s6
  %s9 = scalar_select 0, %s8, %s6
  loop: start=0, step=1, limit=4
  $region2: #{net_forward_prepared.1} parent=0 // loop_pre_header
    _
  $region3: #{net_forward_prepared.1} parent=0 // loop_header
    %s11 = sphi 0, %s15
    %p12 = scmp.ge.s32.totalorder %s11, 4
    %s21 = sphi 0, %s23
    %s24 = sphi 0, %s21
    %s25 = sphi 0, %s24
    %s41 = sphi 0, %s25
    %s45 = sphi 0, %s45
    %s47 = sphi 0, %s45
    %s48 = sphi 0, %s47
    %s62 = sphi 0, %s48
    %s66 = sphi 0, %s66
    %s68 = sphi 0, %s66
    %s69 = sphi 0, %s68
    %s83 = sphi 0, %s69
    %s87 = sphi 0, %s87
    %s89 = sphi 0, %s87
    %s90 = sphi 0, %s89
    %s104 = sphi 0, %s90
    %s108 = sphi 0, %s108
    %s110 = sphi 0, %s108
    %s111 = sphi 0, %s110
    %s125 = sphi 0, %s111
    %s131 = sphi 0, %s133
    %s134 = sphi 0, %s131
    %s135 = sphi 0, %s134
    %s151 = sphi 0, %s135
  $region4: #{net_forward_prepared.1} parent=0 // loop_header_branch
    %14 = sbr.rel (%p12) target = $region8
  $region5: #{net_forward_prepared.1} parent=0 // loop_body
    %s16 = ssub.s32 %s11, 1
    %s17 = ssub.s32 %s11, 2
    %s18 = sadd.s32 %s11, 1
    %s19 = ssub.s32 %s11, %s18
    %p20 = scmp.eq.s32.totalorder %s19, 0
    %s22 = sadd.s32 %s21, 1
    %s23 = scalar_select %p20, %s21, %s22
    %p26 = pneg %p20
    %p27 = scmp.eq.s32.totalorder %s11, 1
    %p28 = por %p26, %p27
    %p29 = scmp.ne.s32.totalorder %s21, %s24
    %p30 = scmp.eq.s32.totalorder %s11, 0
    %p31 = por %p29, %p30
    %p32 = scmp.ne.s32.totalorder %s21, %s24
    %p33 = scmp.eq.s32.totalorder %s16, 1
    %p34 = por %p32, %p33
    %p35 = scmp.ne.s32.totalorder %s24, %s25
    %p36 = scmp.eq.s32.totalorder %s16, 0
    %p37 = por %p35, %p36
    %p38 = scmp.ne.s32.totalorder %s24, %s25
    %p39 = scmp.eq.s32.totalorder %s17, 1
    %p40 = por %p38, %p39
    %p42 = scmp.ne.s32.totalorder %s25, %s41
    %p43 = scmp.eq.s32.totalorder %s17, 0
    %p44 = por %p42, %p43
    %s46 = sadd.s32 %s45, 1
    %p49 = scmp.eq.s32.totalorder %s11, 1
    %p50 = scmp.ne.s32.totalorder %s45, %s47
    %p51 = scmp.eq.s32.totalorder %s11, 0
    %p52 = por %p50, %p51
    %p53 = scmp.ne.s32.totalorder %s45, %s47
    %p54 = scmp.eq.s32.totalorder %s16, 1
    %p55 = por %p53, %p54
    %p56 = scmp.ne.s32.totalorder %s47, %s48
    %p57 = scmp.eq.s32.totalorder %s16, 0
    %p58 = por %p56, %p57
    %p59 = scmp.ne.s32.totalorder %s47, %s48
    %p60 = scmp.eq.s32.totalorder %s17, 1
    %p61 = por %p59, %p60
    %p63 = scmp.ne.s32.totalorder %s48, %s62
    %p64 = scmp.eq.s32.totalorder %s17, 0
    %p65 = por %p63, %p64
    %s67 = sadd.s32 %s66, 1
    %p70 = scmp.eq.s32.totalorder %s11, 1
    %p71 = scmp.ne.s32.totalorder %s66, %s68
    %p72 = scmp.eq.s32.totalorder %s11, 0
    %p73 = por %p71, %p72
    %p74 = scmp.ne.s32.totalorder %s66, %s68
    %p75 = scmp.eq.s32.totalorder %s16, 1
    %p76 = por %p74, %p75
    %p77 = scmp.ne.s32.totalorder %s68, %s69
    %p78 = scmp.eq.s32.totalorder %s16, 0
    %p79 = por %p77, %p78
    %p80 = scmp.ne.s32.totalorder %s68, %s69
    %p81 = scmp.eq.s32.totalorder %s17, 1
    %p82 = por %p80, %p81
    %p84 = scmp.ne.s32.totalorder %s69, %s83
    %p85 = scmp.eq.s32.totalorder %s17, 0
    %p86 = por %p84, %p85
    %s88 = sadd.s32 %s87, 1
    %p91 = scmp.eq.s32.totalorder %s11, 1
    %p92 = scmp.ne.s32.totalorder %s87, %s89
    %p93 = scmp.eq.s32.totalorder %s11, 0
    %p94 = por %p92, %p93
    %p95 = scmp.ne.s32.totalorder %s87, %s89
    %p96 = scmp.eq.s32.totalorder %s16, 1
    %p97 = por %p95, %p96
    %p98 = scmp.ne.s32.totalorder %s89, %s90
    %p99 = scmp.eq.s32.totalorder %s16, 0
    %p100 = por %p98, %p99
    %p101 = scmp.ne.s32.totalorder %s89, %s90
    %p102 = scmp.eq.s32.totalorder %s17, 1
    %p103 = por %p101, %p102
    %p105 = scmp.ne.s32.totalorder %s90, %s104
    %p106 = scmp.eq.s32.totalorder %s17, 0
    %p107 = por %p105, %p106
    %s109 = sadd.s32 %s108, 1
    %p112 = scmp.eq.s32.totalorder %s11, 1
    %p113 = scmp.ne.s32.totalorder %s108, %s110
    %p114 = scmp.eq.s32.totalorder %s11, 0
    %p115 = por %p113, %p114
    %p116 = scmp.ne.s32.totalorder %s108, %s110
    %p117 = scmp.eq.s32.totalorder %s16, 1
    %p118 = por %p116, %p117
    %p119 = scmp.ne.s32.totalorder %s110, %s111
    %p120 = scmp.eq.s32.totalorder %s16, 0
    %p121 = por %p119, %p120
    %p122 = scmp.ne.s32.totalorder %s110, %s111
    %p123 = scmp.eq.s32.totalorder %s17, 1
    %p124 = por %p122, %p123
    %p126 = scmp.ne.s32.totalorder %s111, %s125
    %p127 = scmp.eq.s32.totalorder %s17, 0
    %p128 = por %p126, %p127
    %s129 = ssub.s32 %s11, %s18
    %p130 = scmp.eq.s32.totalorder %s129, 0
    %s132 = sadd.s32 %s131, 1
    %s133 = scalar_select %p130, %s131, %s132
    %p136 = pneg %p130
    %p137 = scmp.eq.s32.totalorder %s11, 1
    %p138 = por %p136, %p137
    %p139 = scmp.ne.s32.totalorder %s131, %s134
    %p140 = scmp.eq.s32.totalorder %s11, 0
    %p141 = por %p139, %p140
    %p142 = scmp.ne.s32.totalorder %s131, %s134
    %p143 = scmp.eq.s32.totalorder %s16, 1
    %p144 = por %p142, %p143
    %p145 = scmp.ne.s32.totalorder %s134, %s135
    %p146 = scmp.eq.s32.totalorder %s16, 0
    %p147 = por %p145, %p146
    %p148 = scmp.ne.s32.totalorder %s134, %s135
    %p149 = scmp.eq.s32.totalorder %s17, 1
    %p150 = por %p148, %p149
    %p152 = scmp.ne.s32.totalorder %s135, %s151
    %p153 = scmp.eq.s32.totalorder %s17, 0
    %p154 = por %p152, %p153
    %p155 = scmp.le.s32.totalorder 1, %s11
    %p156 = scmp.lt.s32.totalorder %s11, 3
    %p157 = pnand %p155, %p156
    %p158 = pneg %p157
    // Predicated region
    $region9: #{net_forward_prepared.1} parent=5 // pred_check
      _
    $region10: #{net_forward_prepared.1} parent=5 // pred_check_branch
      %160 = sbr.rel (%p157) target = $region12
    $region11: #{net_forward_prepared.1} parent=5 // pred_region
      %s161 = ssub.s32 %s11, 1
      // Predicated region
      $region13: #{net_forward_prepared.1} parent=11 // pred_check
        %p162 = pneg %p58
      $region14: #{net_forward_prepared.1} parent=11 // pred_check_branch
        %164 = sbr.rel (%p162) target = $region16
      $region15: #{net_forward_prepared.1} parent=11 // pred_region
        _
      $region16: #{net_forward_prepared.1} parent=11 // pred_fallthru
        _
      // Predicated region
      $region17: #{net_forward_prepared.1} parent=11 // pred_check
        %p165 = pneg %p79
      $region18: #{net_forward_prepared.1} parent=11 // pred_check_branch
        %167 = sbr.rel (%p165) target = $region20
      $region19: #{net_forward_prepared.1} parent=11 // pred_region
        _
      $region20: #{net_forward_prepared.1} parent=11 // pred_fallthru
        _
      // Predicated region
      $region21: #{net_forward_prepared.1} parent=11 // pred_check
        %p168 = pneg %p100
      $region22: #{net_forward_prepared.1} parent=11 // pred_check_branch
        %170 = sbr.rel (%p168) target = $region24
      $region23: #{net_forward_prepared.1} parent=11 // pred_region
        _
      $region24: #{net_forward_prepared.1} parent=11 // pred_fallthru
        _
      // Predicated region
      $region25: #{net_forward_prepared.1} parent=11 // pred_check
        %p171 = pneg %p121
      $region26: #{net_forward_prepared.1} parent=11 // pred_check_branch
        %173 = sbr.rel (%p171) target = $region28
      $region27: #{net_forward_prepared.1} parent=11 // pred_region
        _
      $region28: #{net_forward_prepared.1} parent=11 // pred_fallthru
        _
    $region12: #{net_forward_prepared.1} parent=5 // pred_fallthru
      _
    %p174 = scmp.lt.s32.totalorder %s11, 2
    // Predicated region
    $region29: #{net_forward_prepared.1} parent=5 // pred_check
      %p175 = pneg %p174
    $region30: #{net_forward_prepared.1} parent=5 // pred_check_branch
      %177 = sbr.rel (%p175) target = $region32
    $region31: #{net_forward_prepared.1} parent=5 // pred_region
      // Predicated region
      $region33: #{net_forward_prepared.1} parent=31 // pred_check
        %p178 = pneg %p31
      $region34: #{net_forward_prepared.1} parent=31 // pred_check_branch
        %180 = sbr.rel (%p178) target = $region36
      $region35: #{net_forward_prepared.1} parent=31 // pred_region
        %s181 = smul.u32 16, %s11
        %p182 = scmp.lt.s32.totalorder %s181, 31
        %s183 = scalar_select %p182, %s181, 31
        %s184 = smul.addr %s183, 8
        %s185 = scalar_lea.vmem %s0, %s184
        %s186 = smul.u32 16, %s11
      $region36: #{net_forward_prepared.1} parent=31 // pred_fallthru
        _
    $region32: #{net_forward_prepared.1} parent=5 // pred_fallthru
      _
    %p187 = scmp.le.s32.totalorder 1, %s11
    %p188 = scmp.lt.s32.totalorder %s11, 3
    %p189 = pnand %p187, %p188
    %p190 = pneg %p189
    // Predicated region
    $region37: #{net_forward_prepared.1} parent=5 // pred_check
      _
    $region38: #{net_forward_prepared.1} parent=5 // pred_check_branch
      %192 = sbr.rel (%p189) target = $region40
    $region39: #{net_forward_prepared.1} parent=5 // pred_region
      %s193 = ssub.s32 %s11, 1
      %s194 = smul.u32 16, %s16
      %p195 = scmp.lt.s32.totalorder %s194, 31
      %s196 = scalar_select %p195, %s194, 31
      %s197 = smul.addr %s196, 8
      %s198 = scalar_lea.vmem %s0, %s197
      %p199 = pneg %p37
      %p200 = pneg %p34
      %p201 = pneg %p58
      %p202 = pneg %p55
      %p203 = pneg %p79
      %p204 = pneg %p76
      %p205 = pneg %p100
      %p206 = pneg %p97
      %p207 = pneg %p121
      %p208 = pneg %p118
      %p209 = pneg %p147
      %p210 = pneg %p144
      %s211 = smul.u32 16, %s16
      %p212 = scmp.lt.s32.totalorder %s211, 31
      %s213 = scalar_select %p212, %s211, 31
      %s214 = smul.addr %s213, 8
      %s215 = scalar_lea.vmem %s5, %s214
      %s216 = smul.u32 16, %s16
      %p217 = scmp.lt.s32.totalorder %s216, 31
      %s218 = scalar_select %p217, %s216, 31
      %s219 = smul.addr %s218, 8
      %s220 = scalar_lea.vmem %s0, %s219
      %s221 = smul.u32 16, %s16
      %s222 = smul.u32 16, %s16
      %p223 = scmp.lt.s32.totalorder %s222, 31
      %s224 = scalar_select %p223, %s222, 31
      %s225 = smul.addr %s224, 8
      %s226 = scalar_lea.vmem %s5, %s225
      %s227 = smul.u32 16, %s16
      %v229 = vld [vmem:[%s220] sm:$0xff]
      %v230 = vld [vmem:[%s220 + $0x8] sm:$0xff]
      %v231 = vld [vmem:[%s220 + $0x10] sm:$0xff]
      %v232 = vld [vmem:[%s220 + $0x18] sm:$0xff]
      %v233 = vld [vmem:[%s220 + $0x20] sm:$0xff]
      %v234 = vld [vmem:[%s220 + $0x28] sm:$0xff]
      %v235 = vld [vmem:[%s220 + $0x30] sm:$0xff]
      %v236 = vld [vmem:[%s220 + $0x38] sm:$0xff]
      %v237 = vld [vmem:[%s220 + $0x40] sm:$0xff]
      %v238 = vld [vmem:[%s220 + $0x48] sm:$0xff]
      %v239 = vld [vmem:[%s220 + $0x50] sm:$0xff]
      %v240 = vld [vmem:[%s220 + $0x58] sm:$0xff]
      %v241 = vld [vmem:[%s220 + $0x60] sm:$0xff]
      %v242 = vld [vmem:[%s220 + $0x68] sm:$0xff]
      %v243 = vld [vmem:[%s220 + $0x70] sm:$0xff]
      %v244 = vld [vmem:[%s220 + $0x78] sm:$0xff]
      %v245 = vpack.c.bf16 %v230, %v229
      %v246 = vpack.c.bf16 %v232, %v231
      %v247 = vpack.c.bf16 %v234, %v233
      %v248 = vpack.c.bf16 %v236, %v235
      %v249 = vpack.c.bf16 %v238, %v237
      %v250 = vpack.c.bf16 %v240, %v239
      %v251 = vpack.c.bf16 %v242, %v241
      %v252 = vpack.c.bf16 %v244, %v243
      %v253 = vld [vmem:[%s1] sm:$0xf]
      %v254 = vld [vmem:[%s1 + $0x4] sm:$0xf]
      %v255 = vld [vmem:[%s1 + $0x8] sm:$0xf]
      %v256 = vld [vmem:[%s1 + $0xc] sm:$0xf]
      %v257 = vld [vmem:[%s2] sm:$0x1]
      %v259 = vperm.slane %v257, 0
      %v265 = vunpack.c.l.b16 %v253
      %v266 = vunpack.c.l.b16 %v254
      %v267 = vunpack.c.l.b16 %v255
      %v268 = vunpack.c.l.b16 %v256
      %v269 = vpack.c.b16 %v266, %v265
      %v270 = vpack.c.b16 %v268, %v267
      %vm273 = vcmask 261120
      %v275 = vsel %vm273, %v245, 0
      %v278 = vsel %vm273, %v246, 0
      %v281 = vsel %vm273, %v247, 0
      %v284 = vsel %vm273, %v248, 0
      %v287 = vsel %vm273, %v249, 0
      %v290 = vsel %vm273, %v250, 0
      %v293 = vsel %vm273, %v251, 0
      %v296 = vsel %vm273, %v252, 0
      %298 = vmatpush.bf16.msra.mxu0 0
      %299 = vmatpush.bf16.msra.mxu0 0
      %300 = vmatpush.bf16.msra.mxu0 0
      %301 = vmatpush.bf16.msra.mxu0 0
      %302 = vmatpush.bf16.msra.mxu0 0
      %303 = vmatpush.bf16.msra.mxu0 0
      %304 = vmatpush.bf16.msra.mxu0 %v270
      %305 = vmatpush.bf16.msra.mxu0 %v269
      %306 = vmatmul.bf16.gmra.mxu0 %v275
      %v307 = vpop.f32.mrf.mxu0
      %v308 = vadd.f32 %v259, %v307
      %v309 = vpop.f32.mrf.mxu0
      %v310 = vadd.f32 %v259, %v309
      %311 = vmatmul.bf16.gmra.mxu0 %v278
      %v312 = vpop.f32.mrf.mxu0
      %v313 = vadd.f32 %v259, %v312
      %v314 = vpop.f32.mrf.mxu0
      %v315 = vadd.f32 %v259, %v314
      %316 = vmatmul.bf16.gmra.mxu0 %v281
      %v317 = vpop.f32.mrf.mxu0
      %v318 = vadd.f32 %v259, %v317
      %v319 = vpop.f32.mrf.mxu0
      %v320 = vadd.f32 %v259, %v319
      %321 = vmatmul.bf16.gmra.mxu0 %v284
      %v322 = vpop.f32.mrf.mxu0
      %v323 = vadd.f32 %v259, %v322
      %v324 = vpop.f32.mrf.mxu0
      %v325 = vadd.f32 %v259, %v324
      %326 = vmatmul.bf16.gmra.mxu0 %v287
      %v327 = vpop.f32.mrf.mxu0
      %v328 = vadd.f32 %v259, %v327
      %v329 = vpop.f32.mrf.mxu0
      %v330 = vadd.f32 %v259, %v329
      %331 = vmatmul.bf16.gmra.mxu0 %v290
      %v332 = vpop.f32.mrf.mxu0
      %v333 = vadd.f32 %v259, %v332
      %v334 = vpop.f32.mrf.mxu0
      %v335 = vadd.f32 %v259, %v334
      %336 = vmatmul.bf16.gmra.mxu0 %v293
      %v337 = vpop.f32.mrf.mxu0
      %v338 = vadd.f32 %v259, %v337
      %v339 = vpop.f32.mrf.mxu0
      %v340 = vadd.f32 %v259, %v339
      %341 = vmatmul.bf16.gmra.mxu0 %v296
      %v342 = vpop.f32.mrf.mxu0
      %v343 = vadd.f32 %v259, %v342
      %v344 = vpop.f32.mrf.mxu0
      %v345 = vadd.f32 %v259, %v344
      %346 = vdwg.mxu0
      %v347 = vtanh.pop %v308
      %v348 = vtanh.pop %v310
      %v349 = vtanh.pop %v313
      %v350 = vtanh.pop %v315
      %v351 = vtanh.pop %v318
      %v352 = vtanh.pop %v320
      %v353 = vtanh.pop %v323
      %v354 = vtanh.pop %v325
      %v355 = vtanh.pop %v328
      %v356 = vtanh.pop %v330
      %v357 = vtanh.pop %v333
      %v358 = vtanh.pop %v335
      %v359 = vtanh.pop %v338
      %v360 = vtanh.pop %v340
      %v361 = vtanh.pop %v343
      %v362 = vtanh.pop %v345
      %v363 = vpack.c.bf16 %v348, %v347
      %v364 = vpack.c.bf16 %v350, %v349
      %v365 = vpack.c.bf16 %v352, %v351
      %v366 = vpack.c.bf16 %v354, %v353
      %v367 = vpack.c.bf16 %v356, %v355
      %v368 = vpack.c.bf16 %v358, %v357
      %v369 = vpack.c.bf16 %v360, %v359
      %v370 = vpack.c.bf16 %v362, %v361
      %v371 = vld [vmem:[%s3] sm:$0xf]
      %v372 = vld [vmem:[%s3 + $0x4] sm:$0xf]
      %v373 = vld [vmem:[%s3 + $0x8] sm:$0xf]
      %v374 = vld [vmem:[%s3 + $0xc] sm:$0xf]
      %v375 = vld [vmem:[%s3 + $0x10] sm:$0xf]
      %v376 = vld [vmem:[%s3 + $0x14] sm:$0xf]
      %v377 = vld [vmem:[%s3 + $0x18] sm:$0xf]
      %v378 = vld [vmem:[%s3 + $0x1c] sm:$0xf]
      %v379 = vld [vmem:[%s3 + $0x20] sm:$0xf]
      %v380 = vld [vmem:[%s3 + $0x24] sm:$0xf]
      %v381 = vld [vmem:[%s3 + $0x28] sm:$0xf]
      %v382 = vld [vmem:[%s3 + $0x2c] sm:$0xf]
      %v383 = vld [vmem:[%s3 + $0x30] sm:$0xf]
      %v384 = vld [vmem:[%s3 + $0x34] sm:$0xf]
      %v385 = vld [vmem:[%s3 + $0x38] sm:$0xf]
      %v386 = vld [vmem:[%s3 + $0x3c] sm:$0xf]
      %v387 = vld [vmem:[%s4] sm:$0x1]
      %v389 = vperm.slane %v387, 0
      %v407 = vunpack.c.l.b16 %v371
      %v408 = vunpack.c.l.b16 %v372
      %v409 = vunpack.c.l.b16 %v373
      %v410 = vunpack.c.l.b16 %v374
      %v411 = vunpack.c.l.b16 %v375
      %v412 = vunpack.c.l.b16 %v376
      %v413 = vunpack.c.l.b16 %v377
      %v414 = vunpack.c.l.b16 %v378
      %v415 = vunpack.c.l.b16 %v379
      %v416 = vunpack.c.l.b16 %v380
      %v417 = vunpack.c.l.b16 %v381
      %v418 = vunpack.c.l.b16 %v382
      %v419 = vunpack.c.l.b16 %v383
      %v420 = vunpack.c.l.b16 %v384
      %v421 = vunpack.c.l.b16 %v385
      %v422 = vunpack.c.l.b16 %v386
      %v423 = vpack.c.b16 %v408, %v407
      %v424 = vpack.c.b16 %v410, %v409
      %v425 = vpack.c.b16 %v412, %v411
      %v426 = vpack.c.b16 %v414, %v413
      %v427 = vpack.c.b16 %v416, %v415
      %v428 = vpack.c.b16 %v418, %v417
      %v429 = vpack.c.b16 %v420, %v419
      %v430 = vpack.c.b16 %v422, %v421
      %439 = vmatpush.bf16.msra.mxu0 %v430
      %440 = vmatpush.bf16.msra.mxu0 %v429
      %441 = vmatpush.bf16.msra.mxu0 %v428
      %442 = vmatpush.bf16.msra.mxu0 %v427
      %443 = vmatpush.bf16.msra.mxu0 %v426
      %444 = vmatpush.bf16.msra.mxu0 %v425
      %445 = vmatpush.bf16.msra.mxu0 %v424
      %446 = vmatpush.bf16.msra.mxu0 %v423
      %447 = vmatmul.bf16.gmra.mxu0 %v363
      %v448 = vpop.f32.mrf.mxu0
      %v449 = vadd.f32 %v389, %v448
      %v450 = vpop.f32.mrf.mxu0
      %v451 = vadd.f32 %v389, %v450
      %452 = vmatmul.bf16.gmra.mxu0 %v364
      %v453 = vpop.f32.mrf.mxu0
      %v454 = vadd.f32 %v389, %v453
      %v455 = vpop.f32.mrf.mxu0
      %v456 = vadd.f32 %v389, %v455
      %457 = vmatmul.bf16.gmra.mxu0 %v365
      %v458 = vpop.f32.mrf.mxu0
      %v459 = vadd.f32 %v389, %v458
      %v460 = vpop.f32.mrf.mxu0
      %v461 = vadd.f32 %v389, %v460
      %462 = vmatmul.bf16.gmra.mxu0 %v366
      %v463 = vpop.f32.mrf.mxu0
      %v464 = vadd.f32 %v389, %v463
      %v465 = vpop.f32.mrf.mxu0
      %v466 = vadd.f32 %v389, %v465
      %467 = vmatmul.bf16.gmra.mxu0 %v367
      %v468 = vpop.f32.mrf.mxu0
      %v469 = vadd.f32 %v389, %v468
      %v470 = vpop.f32.mrf.mxu0
      %v471 = vadd.f32 %v389, %v470
      %472 = vmatmul.bf16.gmra.mxu0 %v368
      %v473 = vpop.f32.mrf.mxu0
      %v474 = vadd.f32 %v389, %v473
      %v475 = vpop.f32.mrf.mxu0
      %v476 = vadd.f32 %v389, %v475
      %477 = vmatmul.bf16.gmra.mxu0 %v369
      %v478 = vpop.f32.mrf.mxu0
      %v479 = vadd.f32 %v389, %v478
      %v480 = vpop.f32.mrf.mxu0
      %v481 = vadd.f32 %v389, %v480
      %482 = vmatmul.bf16.gmra.mxu0 %v370
      %v483 = vpop.f32.mrf.mxu0
      %v484 = vadd.f32 %v389, %v483
      %v485 = vpop.f32.mrf.mxu0
      %v486 = vadd.f32 %v389, %v485
      %487 = vdwg.mxu0
      %vm488 = vcmask 130048
      %489 = vst.msk [vmem:[%s226] sm:$0xff] %vm488, %v449
      %490 = vst.msk [vmem:[%s226 + $0x8] sm:$0xff] %vm488, %v451
      %491 = vst.msk [vmem:[%s226 + $0x10] sm:$0xff] %vm488, %v454
      %492 = vst.msk [vmem:[%s226 + $0x18] sm:$0xff] %vm488, %v456
      %493 = vst.msk [vmem:[%s226 + $0x20] sm:$0xff] %vm488, %v459
      %494 = vst.msk [vmem:[%s226 + $0x28] sm:$0xff] %vm488, %v461
      %495 = vst.msk [vmem:[%s226 + $0x30] sm:$0xff] %vm488, %v464
      %496 = vst.msk [vmem:[%s226 + $0x38] sm:$0xff] %vm488, %v466
      %497 = vst.msk [vmem:[%s226 + $0x40] sm:$0xff] %vm488, %v469
      %498 = vst.msk [vmem:[%s226 + $0x48] sm:$0xff] %vm488, %v471
      %499 = vst.msk [vmem:[%s226 + $0x50] sm:$0xff] %vm488, %v474
      %500 = vst.msk [vmem:[%s226 + $0x58] sm:$0xff] %vm488, %v476
      %501 = vst.msk [vmem:[%s226 + $0x60] sm:$0xff] %vm488, %v479
      %502 = vst.msk [vmem:[%s226 + $0x68] sm:$0xff] %vm488, %v481
      %503 = vst.msk [vmem:[%s226 + $0x70] sm:$0xff] %vm488, %v484
      %504 = vst.msk [vmem:[%s226 + $0x78] sm:$0xff] %vm488, %v486
      %s505 = smul.u32 16, %s16
      %p506 = scmp.lt.s32.totalorder %s505, 31
      %s507 = scalar_select %p506, %s505, 31
      %s508 = smul.addr %s507, 8
      %s509 = scalar_lea.vmem %s5, %s508
      // Predicated region
      $region41: #{net_forward_prepared.1} parent=39 // pred_check
        %p510 = pneg %p144
      $region42: #{net_forward_prepared.1} parent=39 // pred_check_branch
        %512 = sbr.rel (%p510) target = $region44
      $region43: #{net_forward_prepared.1} parent=39 // pred_region
        %s513 = smul.u32 16, %s16
      $region44: #{net_forward_prepared.1} parent=39 // pred_fallthru
        _
    $region40: #{net_forward_prepared.1} parent=5 // pred_fallthru
      _
    %p514 = scmp.le.s32.totalorder 2, %s11
    // Predicated region
    $region45: #{net_forward_prepared.1} parent=5 // pred_check
      %p515 = pneg %p514
    $region46: #{net_forward_prepared.1} parent=5 // pred_check_branch
      %517 = sbr.rel (%p515) target = $region48
    $region47: #{net_forward_prepared.1} parent=5 // pred_region
      %s518 = ssub.s32 %s11, 2
      // Predicated region
      $region49: #{net_forward_prepared.1} parent=47 // pred_check
        %p519 = pneg %p150
      $region50: #{net_forward_prepared.1} parent=47 // pred_check_branch
        %521 = sbr.rel (%p519) target = $region52
      $region51: #{net_forward_prepared.1} parent=47 // pred_region
        %s522 = smul.u32 16, %s17
        %p523 = scmp.lt.s32.totalorder %s522, 31
        %s524 = scalar_select %p523, %s522, 31
        %s525 = smul.addr %s524, 8
        %s526 = scalar_lea.vmem %s5, %s525
      $region52: #{net_forward_prepared.1} parent=47 // pred_fallthru
        _
    $region48: #{net_forward_prepared.1} parent=5 // pred_fallthru
      _
  $region6: #{net_forward_prepared.1} parent=0 // loop_footer
    %s15 = sadd.s32 1, %s11
  $region7: #{net_forward_prepared.1} parent=0 // loop_footer_branch
    %10 = sbr.rel target = $region3
  $region8: #{net_forward_prepared.1} parent=0 // loop_exit
    _

</llo_original>
